<compile_context>
chip_gen: v7x
topology: tpu7x:2x2x1
jax: 0.10.0
libtpu: 0.0.40
codegen_flags: <defaults>
</compile_context>

<pallas_src>
import functools
import numpy as np

import jax
import jax.numpy as jnp
from jax import lax
from jax.experimental import pallas as pl
from jax.experimental.pallas import tpu as pltpu


def _shift_along_axis(a, d, axis):
    """result[..., i, ...] = a[..., i - d, ...] along `axis`, zero padded (static d)."""
    if d == 0:
        return a
    n = a.shape[axis]
    pad_shape = list(a.shape)
    pad_shape[axis] = abs(d)
    zeros = jnp.zeros(pad_shape, a.dtype)
    if d > 0:
        kept = lax.slice_in_dim(a, 0, n - d, axis=axis)
        return jnp.concatenate([zeros, kept], axis=axis)
    else:
        kept = lax.slice_in_dim(a, -d, n, axis=axis)
        return jnp.concatenate([kept, zeros], axis=axis)


def _shift_kernel(kernel_size, c_block, num_channels, shift_ref, x_ref, o_ref):
    # shift_ref: (2, C) int32 in SMEM (scalar prefetch).  Row 0 = sx (W shift),
    #            row 1 = sy (H shift)  (matches shift_t[c] = (sx, sy)).
    # x_ref / o_ref: (c_block, H, W) NCHW block (W on lanes, H on sublanes).
    r = kernel_size // 2
    c0 = pl.program_id(1) * c_block

    def body(i, carry):
        c = c0 + i
        sx = shift_ref[0, c]
        sy = shift_ref[1, c]
        xc = x_ref[i]                       # (H, W) slab; stays in vregs

        # rows: t[h, w] = xc[h - sy, w]  (0 outside) -- static candidates,
        # selected by the scalar per-channel predicate, fused in vregs.
        t = jnp.zeros_like(xc)
        for dy in range(-r, r + 1):
            t = jnp.where(sy == dy, _shift_along_axis(xc, dy, 0), t)

        # cols: o[h, w] = t[h, w - sx]  (0 outside)
        o = jnp.zeros_like(xc)
        for dx in range(-r, r + 1):
            o = jnp.where(sx == dx, _shift_along_axis(t, dx, 1), o)

        o_ref[i] = o                        # single store pass per element
        return carry

    if num_channels % c_block == 0:
        lax.fori_loop(0, c_block, body, 0, unroll=(c_block <= 8))
    else:
        n_valid = jnp.minimum(c_block, num_channels - c0)
        lax.fori_loop(0, n_valid, body, 0)


def _choose_c_block(B, C, H, W, itemsize, *, pipeline_budget_bytes=12 << 20,
                    target_grid_steps=8):
    """Channel block size: fill the pipeline-buffer budget (in+out, double
    buffered = 4x block) but keep >= target grid steps when C allows, so both
    v7x TensorCores get work and the pipeline has prefetch depth."""
    slab = H * W * itemsize
    cb = max(1, pipeline_budget_bytes // (4 * slab))
    steps_from_c = max(1, -(-target_grid_steps // max(1, B)))   # ceil
    cb = min(cb, max(1, -(-C // steps_from_c)))                 # ceil
    return int(max(1, min(cb, C)))


def shift_forward(x, shift_t, kernel_size, *, c_block=None):
    """x: (B, C, H, W) float, shift_t: (C, 2) int32 -> (B, C, H, W)."""
    B, C, H, W = x.shape
    r = kernel_size // 2
    assert H > r and W > r, "feature map must be larger than the shift radius"
    assert shift_t.shape == (C, 2)
    itemsize = jnp.dtype(x.dtype).itemsize

    if c_block is None:
        c_block = _choose_c_block(B, C, H, W, itemsize)
    c_block = int(min(c_block, C))
    n_cblk = pl.cdiv(C, c_block)

    # (C, 2) -> (2, C): SMEM pads (2, C) to (8, round_up(C, 128)) words only.
    shift2 = jnp.transpose(shift_t.astype(jnp.int32), (1, 0))

    # Corrected VMEM accounting: in + out blocks double-buffered by the
    # pipeline, plus a few per-channel slabs of (mostly vreg-resident)
    # temporaries, plus slack.  Always set vmem_limit_bytes explicitly.
    block_bytes = c_block * H * W * itemsize
    slab_bytes = H * W * itemsize
    vmem_need = 4 * block_bytes + 8 * slab_bytes + (2 << 20)
    vmem_limit = int(min(max(vmem_need, 16 << 20), 64 << 20))

    kern = functools.partial(_shift_kernel, kernel_size, c_block, C)
    return pl.pallas_call(
        kern,
        out_shape=jax.ShapeDtypeStruct((B, C, H, W), x.dtype),
        grid_spec=pltpu.PrefetchScalarGridSpec(
            num_scalar_prefetch=1,
            grid=(B, n_cblk),
            in_specs=[pl.BlockSpec((None, c_block, H, W),
                                   lambda b, j, shifts: (b, j, 0, 0))],
            out_specs=pl.BlockSpec((None, c_block, H, W),
                                   lambda b, j, shifts: (b, j, 0, 0)),
        ),
        compiler_params=pltpu.CompilerParams(
            dimension_semantics=("parallel", "parallel"),
            vmem_limit_bytes=vmem_limit),
    )(shift2, x)


def make_shift_t(key, in_channels, kernel_size):
    """Deterministic re-implementation of Shift.__init__'s categorical sample."""
    if kernel_size == 3:
        p = jnp.array([0.3, 0.4, 0.3], dtype=jnp.float32)
    elif kernel_size == 5:
        p = jnp.array([0.1, 0.25, 0.3, 0.25, 0.1], dtype=jnp.float32)
    elif kernel_size == 7:
        p = jnp.array([0.075, 0.1, 0.175, 0.3, 0.175, 0.1, 0.075], dtype=jnp.float32)
    elif kernel_size == 9:
        p = jnp.array([0.05, 0.075, 0.1, 0.175, 0.2, 0.175, 0.1, 0.075, 0.05],
                      dtype=jnp.float32)
    else:
        raise RuntimeError("Unsupported kernel size")
    samples = jax.random.categorical(key, jnp.log(p), shape=(in_channels, 2))
    return (samples - kernel_size // 2).astype(jnp.int32)


def shift_reference(x, shift_t):
    """Pure numpy reference matching shift_cuda.forward semantics."""
    x = np.asarray(x)
    s = np.asarray(shift_t)
    B, C, H, W = x.shape
    out = np.zeros_like(x)
    for c in range(C):
        sx, sy = int(s[c, 0]), int(s[c, 1])
        for h in range(H):
            hs = h - sy
            if hs < 0 or hs >= H:
                continue
            for w in range(W):
                ws = w - sx
                if ws < 0 or ws >= W:
                    continue
                out[:, c, h, w] = x[:, c, hs, ws]
    return out


if __name__ == "__main__":
    key = jax.random.PRNGKey(0)
    k_x, k_s = jax.random.split(key)

    B, C, H, W = 2, 4, 16, 16
    kernel_size = 3

    x = jax.random.normal(k_x, (B, C, H, W), dtype=jnp.float32)
    shift_t = make_shift_t(k_s, C, kernel_size)

    out = shift_forward(x, shift_t, kernel_size)
    out = jax.block_until_ready(out)

    ref = shift_reference(x, shift_t)
    np.testing.assert_allclose(np.asarray(out), ref, atol=1e-6)
    print("KERNEL_OK")
</pallas_src>

<mosaic_0001>
module attributes {stable_mosaic.version = 11 : i64} {
  func.func @_shift_kernel(%arg0: i32, %arg1: i32, %arg2: memref<2x4xi32, #tpu.memory_space<smem>>, %arg3: memref<1x1x16x16xf32, #tpu.memory_space<vmem>>, %arg4: memref<1x1x16x16xf32, #tpu.memory_space<vmem>>) attributes {dimension_semantics = [#tpu.dimension_semantics<parallel>, #tpu.dimension_semantics<parallel>], iteration_bounds = array<i64: 2, 4>, scalar_prefetch = 1 : i64, scratch_operands = 0 : i64, tpu.core_type = #tpu.core_type<tc>, window_params = [{transform_indices = @transform_0, window_bounds = array<i64: 1, 1, 16, 16>}, {transform_indices = @transform_1, window_bounds = array<i64: 1, 1, 16, 16>}]} {
    %c1_i32 = arith.constant 1 : i32
    %0 = arith.muli %arg1, %c1_i32 : i32
    %c0_i32 = arith.constant 0 : i32
    %1 = arith.addi %0, %c0_i32 : i32
    %c0 = arith.constant 0 : index
    %2 = arith.index_cast %1 : i32 to index
    %3 = memref.load %arg2[%c0, %2] : memref<2x4xi32, #tpu.memory_space<smem>>
    %c1 = arith.constant 1 : index
    %4 = arith.index_cast %1 : i32 to index
    %5 = memref.load %arg2[%c1, %4] : memref<2x4xi32, #tpu.memory_space<smem>>
    %c0_0 = arith.constant 0 : index
    %6 = arith.index_cast %c0_i32 : i32 to index
    %c0_1 = arith.constant 0 : index
    %c0_2 = arith.constant 0 : index
    %7 = vector.load %arg3[%c0_0, %6, %c0_1, %c0_2] : memref<1x1x16x16xf32, #tpu.memory_space<vmem>>, vector<1x1x16x16xf32>
    %8 = vector.shape_cast %7 : vector<1x1x16x16xf32> to vector<16x16xf32>
    %cst = arith.constant 0.000000e+00 : f32
    %9 = vector.broadcast %cst : f32 to vector<16x16xf32>
    %c-1_i32 = arith.constant -1 : i32
    %10 = arith.cmpi eq, %5, %c-1_i32 : i32
    %cst_3 = arith.constant 0.000000e+00 : f32
    %11 = vector.broadcast %cst_3 : f32 to vector<1x16xf32>
    %12 = vector.extract_strided_slice %8 {offsets = [1, 0], sizes = [15, 16], strides = [1, 1]} : vector<16x16xf32> to vector<15x16xf32>
    %13 = tpu.concatenate %12, %11 in 0 : vector<15x16xf32>, vector<1x16xf32> -> vector<16x16xf32>
    %14 = arith.select %10, %13, %9 : vector<16x16xf32>
    %c0_i32_4 = arith.constant 0 : i32
    %15 = arith.cmpi eq, %5, %c0_i32_4 : i32
    %16 = arith.select %15, %8, %14 : vector<16x16xf32>
    %c1_i32_5 = arith.constant 1 : i32
    %17 = arith.cmpi eq, %5, %c1_i32_5 : i32
    %cst_6 = arith.constant 0.000000e+00 : f32
    %18 = vector.broadcast %cst_6 : f32 to vector<1x16xf32>
    %19 = vector.extract_strided_slice %8 {offsets = [0, 0], sizes = [15, 16], strides = [1, 1]} : vector<16x16xf32> to vector<15x16xf32>
    %20 = tpu.concatenate %18, %19 in 0 : vector<1x16xf32>, vector<15x16xf32> -> vector<16x16xf32>
    %21 = arith.select %17, %20, %16 : vector<16x16xf32>
    %cst_7 = arith.constant 0.000000e+00 : f32
    %22 = vector.broadcast %cst_7 : f32 to vector<16x16xf32>
    %c-1_i32_8 = arith.constant -1 : i32
    %23 = arith.cmpi eq, %3, %c-1_i32_8 : i32
    %cst_9 = arith.constant 0.000000e+00 : f32
    %24 = vector.broadcast %cst_9 : f32 to vector<16x1xf32>
    %25 = vector.extract_strided_slice %21 {offsets = [0, 1], sizes = [16, 15], strides = [1, 1]} : vector<16x16xf32> to vector<16x15xf32>
    %26 = tpu.concatenate %25, %24 in 1 : vector<16x15xf32>, vector<16x1xf32> -> vector<16x16xf32>
    %27 = arith.select %23, %26, %22 : vector<16x16xf32>
    %c0_i32_10 = arith.constant 0 : i32
    %28 = arith.cmpi eq, %3, %c0_i32_10 : i32
    %29 = arith.select %28, %21, %27 : vector<16x16xf32>
    %c1_i32_11 = arith.constant 1 : i32
    %30 = arith.cmpi eq, %3, %c1_i32_11 : i32
    %cst_12 = arith.constant 0.000000e+00 : f32
    %31 = vector.broadcast %cst_12 : f32 to vector<16x1xf32>
    %32 = vector.extract_strided_slice %21 {offsets = [0, 0], sizes = [16, 15], strides = [1, 1]} : vector<16x16xf32> to vector<16x15xf32>
    %33 = tpu.concatenate %31, %32 in 1 : vector<16x1xf32>, vector<16x15xf32> -> vector<16x16xf32>
    %34 = arith.select %30, %33, %29 : vector<16x16xf32>
    %c0_13 = arith.constant 0 : index
    %35 = arith.index_cast %c0_i32 : i32 to index
    %c0_14 = arith.constant 0 : index
    %c0_15 = arith.constant 0 : index
    %36 = vector.load %arg4[%c0_13, %35, %c0_14, %c0_15] : memref<1x1x16x16xf32, #tpu.memory_space<vmem>>, vector<1x1x16x16xf32>
    %37 = vector.shape_cast %36 : vector<1x1x16x16xf32> to vector<16x16xf32>
    %38 = vector.shape_cast %34 : vector<16x16xf32> to vector<1x1x16x16xf32>
    tpu.vector_store %arg4[%c0_13, %35, %c0_14, %c0_15], %38 {strides = array<i32>} : memref<1x1x16x16xf32, #tpu.memory_space<vmem>>, vector<1x1x16x16xf32>,
    %c1_i32_16 = arith.constant 1 : i32
    return
  }
  func.func @transform_0(%arg0: i32, %arg1: i32, %arg2: memref<2x4xi32, #tpu.memory_space<smem>>) -> (i32, i32, i32, i32) {
    %c0_i32 = arith.constant 0 : i32
    %c0_i32_0 = arith.constant 0 : i32
    %c0_i32_1 = arith.constant 0 : i32
    return %arg0, %arg1, %c0_i32, %c0_i32_0 : i32, i32, i32, i32
  }
  func.func @transform_1(%arg0: i32, %arg1: i32, %arg2: memref<2x4xi32, #tpu.memory_space<smem>>) -> (i32, i32, i32, i32) {
    %c0_i32 = arith.constant 0 : i32
    %c0_i32_0 = arith.constant 0 : i32
    %c0_i32_1 = arith.constant 0 : i32
    return %arg0, %arg1, %c0_i32, %c0_i32_0 : i32, i32, i32, i32
  }
}

</mosaic_0001>

<llo_original>
// kernel: tpu_custom_call.1
$region0: #{tpu_custom_call.1}
  #allocation0 [shape = 'u32[]', space=smem, size = 0x4, offset = 0x4, fixed_abs, tag = 'smem constant byte address 0x4 - core index']
  #allocation1 [shape = 'u32[144,128]{1,0:T(1,128)}', space=vmem, size = 0x12000, scoped, tag = 'internal scratch']
  #allocation2 [shape = 's32[1]{0}', space=sflag, size = 0x4, scoped, tag = 'scoped memory for tpu_custom_call.1']
  #allocation3 [shape = 'u8[1024]{0}', space=smem, size = 0x400, scoped, tag = 'prefetched SMEM operand 0']
  %s0 = inlined_call_operand.hbm [shape: s32[2,4], index: 0, kind: input, shape index: {}]
  %s1 = inlined_call_operand.hbm [shape: f32[2,4,16,16], index: 1, kind: input, shape index: {}]
  %s2 = inlined_call_operand.hbm [shape: f32[2,4,16,16], index: 2, kind: output, shape index: {}]
  %s3 = sld [smem:[#allocation0]]
  $region41: #{tpu_custom_call.1} parent=0
    _
  %s5 = ssub.s32 1, %s3
  %s6 = scalar_select 0, %s5, %s3
  %8 = dma.hbm_to_smem %s0, 32, [#allocation3], [#allocation2]
  %9 = dma.done [#allocation2], 32
  %10 = sfence
  $region1: #{tpu_custom_call.1} parent=0
    #allocation4 [shape = 'u8[16384]{0}', space=vmem, size = 0x4000, scoped, tag = 'input window, operand 1']
    #allocation5 [shape = 's32[2]{0}', space=sflag, size = 0x8, scoped, tag = 'scoped memory for tpu_custom_call.1']
    #allocation6 [shape = 's32[2]{0}', space=sflag, size = 0x8, scoped, tag = 'scoped memory for tpu_custom_call.1']
    #allocation7 [shape = 'u8[16384]{0}', space=vmem, size = 0x4000, scoped, tag = 'output window, operand 0']
    %11 = vsyncpa [#allocation5], 0
    %s12 = scalar_lea.sflag [#allocation5], 1
    %13 = vsyncpa %s12, 0
    %14 = vsyncpa [#allocation6], 0
    %s15 = scalar_lea.sflag [#allocation6], 1
    %16 = vsyncpa %s15, 0
    loop: start=0, step=1, limit=10
    $region2: #{tpu_custom_call.1} parent=1 // loop_pre_header
      _
    $region3: #{tpu_custom_call.1} parent=1 // loop_header
      %s18 = sphi 0, %s22
      %p19 = scmp.ge.s32.totalorder %s18, 10
      %s25 = sphi 0, %s37
      %s26 = sphi 0, %s33
      %s27 = sphi 0, %s25
      %s28 = sphi 0, %s26
      %s29 = sphi 0, %s27
      %s30 = sphi 0, %s28
      %s42 = sphi 0, %s44
      %s45 = sphi 0, %s42
      %s46 = sphi 0, %s45
      %s62 = sphi 0, %s46
      %s70 = sphi 0, %s72
      %s73 = sphi 0, %s70
      %s74 = sphi 0, %s73
      %s90 = sphi 0, %s74
    $region4: #{tpu_custom_call.1} parent=1 // loop_header_branch
      %21 = sbr.rel (%p19) target = $region8
    $region5: #{tpu_custom_call.1} parent=1 // loop_body
      %s23 = ssub.s32 %s18, 1
      %s24 = ssub.s32 %s18, 2
      %s31 = sadd.s32 1, %s26
      %p32 = scmp.ge.s32.totalorder %s31, 4
      %s33 = scalar_select %p32, 0, %s31
      %s34 = sadd.s32 1, %s25
      %s35 = scalar_select %p32, %s34, %s25
      %p36 = scmp.ge.s32.totalorder %s35, 2
      %s37 = scalar_select %p36, 0, %s35
      %s38 = ssub.s32 %s25, %s37
      %s39 = ssub.s32 %s26, %s33
      %s40 = sor.u32 %s38, %s39
      %p41 = scmp.eq.s32.totalorder %s40, 0
      %s43 = sadd.s32 %s42, 1
      %s44 = scalar_select %p41, %s42, %s43
      %p47 = pneg %p41
      %p48 = scmp.eq.s32.totalorder %s18, 7
      %p49 = por %p47, %p48
      %p50 = scmp.ne.s32.totalorder %s42, %s45
      %p51 = scmp.eq.s32.totalorder %s18, 0
      %p52 = por %p50, %p51
      %p53 = scmp.ne.s32.totalorder %s42, %s45
      %p54 = scmp.eq.s32.totalorder %s23, 7
      %p55 = por %p53, %p54
      %p56 = scmp.ne.s32.totalorder %s45, %s46
      %p57 = scmp.eq.s32.totalorder %s23, 0
      %p58 = por %p56, %p57
      %p59 = scmp.ne.s32.totalorder %s45, %s46
      %p60 = scmp.eq.s32.totalorder %s24, 7
      %p61 = por %p59, %p60
      %p63 = scmp.ne.s32.totalorder %s46, %s62
      %p64 = scmp.eq.s32.totalorder %s24, 0
      %p65 = por %p63, %p64
      %s66 = ssub.s32 %s25, %s37
      %s67 = ssub.s32 %s26, %s33
      %s68 = sor.u32 %s66, %s67
      %p69 = scmp.eq.s32.totalorder %s68, 0
      %s71 = sadd.s32 %s70, 1
      %s72 = scalar_select %p69, %s70, %s71
      %p75 = pneg %p69
      %p76 = scmp.eq.s32.totalorder %s18, 7
      %p77 = por %p75, %p76
      %p78 = scmp.ne.s32.totalorder %s70, %s73
      %p79 = scmp.eq.s32.totalorder %s18, 0
      %p80 = por %p78, %p79
      %p81 = scmp.ne.s32.totalorder %s70, %s73
      %p82 = scmp.eq.s32.totalorder %s23, 7
      %p83 = por %p81, %p82
      %p84 = scmp.ne.s32.totalorder %s73, %s74
      %p85 = scmp.eq.s32.totalorder %s23, 0
      %p86 = por %p84, %p85
      %p87 = scmp.ne.s32.totalorder %s73, %s74
      %p88 = scmp.eq.s32.totalorder %s24, 7
      %p89 = por %p87, %p88
      %p91 = scmp.ne.s32.totalorder %s74, %s90
      %p92 = scmp.eq.s32.totalorder %s24, 0
      %p93 = por %p91, %p92
      %p94 = scmp.le.s32.totalorder 1, %s18
      %p95 = scmp.lt.s32.totalorder %s18, 9
      %p96 = pnand %p94, %p95
      %p97 = pneg %p96
      // Predicated region
      $region9: #{tpu_custom_call.1} parent=5 // pred_check
        _
      $region10: #{tpu_custom_call.1} parent=5 // pred_check_branch
        %99 = sbr.rel (%p96) target = $region12
      $region11: #{tpu_custom_call.1} parent=5 // pred_region
        %s100 = ssub.s32 %s18, 1
      $region12: #{tpu_custom_call.1} parent=5 // pred_fallthru
        _
      %p101 = scmp.lt.s32.totalorder %s18, 8
      // Predicated region
      $region13: #{tpu_custom_call.1} parent=5 // pred_check
        %p102 = pneg %p101
      $region14: #{tpu_custom_call.1} parent=5 // pred_check_branch
        %104 = sbr.rel (%p102) target = $region16
      $region15: #{tpu_custom_call.1} parent=5 // pred_region
        // Predicated region
        $region17: #{tpu_custom_call.1} parent=15 // pred_check
          %p105 = pneg %p52
        $region18: #{tpu_custom_call.1} parent=15 // pred_check_branch
          %107 = sbr.rel (%p105) target = $region20
        $region19: #{tpu_custom_call.1} parent=15 // pred_region
          %s108 = sand.u32 %s42, 1
          %s109 = scalar_lea.sflag [#allocation5], %s108
          %s110 = sand.u32 %s42, 1
          %s111 = smul.addr %s110, 16
          %s112 = scalar_lea.vmem [#allocation4], %s111
          %s114 = ssub.s32 256, 256
          %115 = vsyncadd %s109, %s114
          %s116 = smul.addr %s26, 2
          %s117 = smul.addr %s25, 8
          %s118 = sadd.s32 %s116, %s117
          %s119 = smul.addr %s118, 128
          %s120 = scalar_lea.hbm %s1, %s119
          %s121 = sshll.u32 %s112, 4
          %s122 = int_to_ptr.vmem [resolvable:$true] %s121
          %127 = dma.hbm_to_vmem [thread:$0]  %s120, 256, %s122, %s109, 128, 128, 8
        $region20: #{tpu_custom_call.1} parent=15 // pred_fallthru
          _
      $region16: #{tpu_custom_call.1} parent=5 // pred_fallthru
        _
      %p128 = scmp.le.s32.totalorder 1, %s18
      %p129 = scmp.lt.s32.totalorder %s18, 9
      %p130 = pnand %p128, %p129
      %p131 = pneg %p130
      // Predicated region
      $region21: #{tpu_custom_call.1} parent=5 // pred_check
        _
      $region22: #{tpu_custom_call.1} parent=5 // pred_check_branch
        %133 = sbr.rel (%p130) target = $region24
      $region23: #{tpu_custom_call.1} parent=5 // pred_region
        %s134 = ssub.s32 %s18, 1
        %s135 = sand.u32 %s45, 1
        %s136 = scalar_lea.sflag [#allocation5], %s135
        %s137 = sand.u32 %s45, 1
        %s138 = smul.addr %s137, 16
        %s139 = scalar_lea.vmem [#allocation4], %s138
        // Predicated region
        $region25: #{tpu_custom_call.1} parent=23 // pred_check
          %p140 = pneg %p58
        $region26: #{tpu_custom_call.1} parent=23 // pred_check_branch
          %142 = sbr.rel (%p140) target = $region28
        $region27: #{tpu_custom_call.1} parent=23 // pred_region
          %143 = dma.done %s136, 256
        $region28: #{tpu_custom_call.1} parent=23 // pred_fallthru
          _
        %s144 = sand.u32 %s45, 1
        %s145 = scalar_lea.sflag [#allocation5], %s144
        %s146 = sand.u32 %s45, 1
        %s147 = smul.addr %s146, 16
        %s148 = scalar_lea.vmem [#allocation4], %s147
        %p149 = pneg %p58
        %p150 = pneg %p55
        %p151 = pneg %p86
        %p152 = pneg %p83
        %s153 = sand.u32 %s73, 1
        %s154 = scalar_lea.sflag [#allocation6], %s153
        %s155 = sand.u32 %s73, 1
        %s156 = smul.addr %s155, 16
        %s157 = scalar_lea.vmem [#allocation7], %s156
        %s158 = sld [smem:[#allocation3 + %s28]]
        %s159 = sshra.s32 %s28, 7
        %s160 = sand.u32 %s28, 127
        %s161 = sadd.s32 %s159, 1
        %s162 = smul.u32 %s161, 128
        %s163 = sshra.s32 %s28, 7
        %s164 = sand.u32 %s28, 127
        %s165 = sadd.s32 %s162, %s164
        %s166 = sld [smem:[#allocation3 + %s165]]
        %v167 = vld [vmem:[%s139] sm:$0xff]
        %v168 = vld [vmem:[%s139 + $0x8] sm:$0xff]
        %p169 = scmp.eq.s32.totalorder %s166, 4294967295
        %vm172 = vcmask 1046528
        %v173 = vrot.slane %v167, 1
        %v174 = vrot.slane %v168, 1
        %v175 = vsel %vm172, %v173, %v174
        %v178 = vsel %vm172, %v174, 0.0
        %s179 = scalar_select %p169, 1, 0
        %v180 = vstv %s179
        %vm181 = vcmp.eq.s32.totalorder %v180, 1
        %v182 = vsel %vm181, %v175, 0.0
        %v183 = vsel %vm181, %v178, 0.0
        %p184 = scmp.eq.s32.totalorder %s166, 0
        %s185 = scalar_select %p184, 1, 0
        %v186 = vstv %s185
        %vm187 = vcmp.eq.s32.totalorder %v186, 1
        %v188 = vsel %vm187, %v167, %v182
        %v189 = vsel %vm187, %v168, %v183
        %p190 = scmp.eq.s32.totalorder %s166, 1
        %vm191 = vcmask 1040384
        %v192 = vrot.slane %v167, 7
        %v193 = vrot.slane %v168, 7
        %v194 = vsel %vm191, %v192, %v193
        %v197 = vsel %vm191, 0.0, %v192
        %s198 = scalar_select %p190, 1, 0
        %v199 = vstv %s198
        %vm200 = vcmp.eq.s32.totalorder %v199, 1
        %v201 = vsel %vm200, %v197, %v188
        %v202 = vsel %vm200, %v194, %v189
        %p203 = scmp.eq.s32.totalorder %s158, 4294967295
        %206 = vrot.lane.b32.xlu0 %v201, 127
        %v207 = vpop.permute.xlu0 %206
        %208 = vrot.lane.b32.xlu0 %v202, 127
        %v209 = vpop.permute.xlu0 %208
        %vm212 = vcmask 121856
        %v213 = vsel %vm212, %v207, 0.0
        %v214 = vsel %vm212, %v209, 0.0
        %s215 = scalar_select %p203, 1, 0
        %v216 = vstv %s215
        %vm217 = vcmp.eq.s32.totalorder %v216, 1
        %v218 = vsel %vm217, %v213, 0.0
        %v219 = vsel %vm217, %v214, 0.0
        %p220 = scmp.eq.s32.totalorder %s158, 0
        %s221 = scalar_select %p220, 1, 0
        %v222 = vstv %s221
        %vm223 = vcmp.eq.s32.totalorder %v222, 1
        %v224 = vsel %vm223, %v201, %v218
        %v225 = vsel %vm223, %v202, %v219
        %p226 = scmp.eq.s32.totalorder %s158, 1
        %227 = vrot.lane.b32.xlu0 %v201, 1
        %v228 = vpop.permute.xlu0 %227
        %229 = vrot.lane.b32.xlu0 %v202, 1
        %v230 = vpop.permute.xlu0 %229
        %vm233 = vcmask 7168
        %v234 = vsel %vm233, 0.0, %v228
        %v235 = vsel %vm233, 0.0, %v230
        %s236 = scalar_select %p226, 1, 0
        %v237 = vstv %s236
        %vm238 = vcmp.eq.s32.totalorder %v237, 1
        %v239 = vsel %vm238, %v234, %v224
        %v240 = vsel %vm238, %v235, %v225
        %vm241 = vcmask 130048
        %242 = vst.msk [vmem:[%s157] sm:$0xff] %vm241, %v239
        %243 = vst.msk [vmem:[%s157 + $0x8] sm:$0xff] %vm241, %v240
        %s244 = sand.u32 %s73, 1
        %s245 = scalar_lea.sflag [#allocation6], %s244
        %s246 = sand.u32 %s73, 1
        %s247 = smul.addr %s246, 16
        %s248 = scalar_lea.vmem [#allocation7], %s247
        // Predicated region
        $region29: #{tpu_custom_call.1} parent=23 // pred_check
          %p249 = pneg %p83
        $region30: #{tpu_custom_call.1} parent=23 // pred_check_branch
          %251 = sbr.rel (%p249) target = $region32
        $region31: #{tpu_custom_call.1} parent=23 // pred_region
          %s253 = ssub.s32 256, 256
          %254 = vsyncadd %s245, %s253
          %s255 = smul.addr %s28, 2
          %s256 = smul.addr %s27, 8
          %s257 = sadd.s32 %s255, %s256
          %s258 = smul.addr %s257, 128
          %s259 = scalar_lea.hbm %s2, %s258
          %s260 = sshll.u32 %s248, 4
          %s261 = int_to_ptr.vmem [resolvable:$true] %s260
          %266 = dma.vmem_to_hbm [thread:$0]  %s261, 256, %s259, %s245, 128, 128, 8
        $region32: #{tpu_custom_call.1} parent=23 // pred_fallthru
          _
      $region24: #{tpu_custom_call.1} parent=5 // pred_fallthru
        _
      %p267 = scmp.le.s32.totalorder 2, %s18
      // Predicated region
      $region33: #{tpu_custom_call.1} parent=5 // pred_check
        %p268 = pneg %p267
      $region34: #{tpu_custom_call.1} parent=5 // pred_check_branch
        %270 = sbr.rel (%p268) target = $region36
      $region35: #{tpu_custom_call.1} parent=5 // pred_region
        %s271 = ssub.s32 %s18, 2
        // Predicated region
        $region37: #{tpu_custom_call.1} parent=35 // pred_check
          %p272 = pneg %p89
        $region38: #{tpu_custom_call.1} parent=35 // pred_check_branch
          %274 = sbr.rel (%p272) target = $region40
        $region39: #{tpu_custom_call.1} parent=35 // pred_region
          %s275 = sand.u32 %s74, 1
          %s276 = scalar_lea.sflag [#allocation6], %s275
          %s277 = sand.u32 %s74, 1
          %s278 = smul.addr %s277, 16
          %s279 = scalar_lea.vmem [#allocation7], %s278
          %280 = dma.done %s276, 256
        $region40: #{tpu_custom_call.1} parent=35 // pred_fallthru
          _
      $region36: #{tpu_custom_call.1} parent=5 // pred_fallthru
        _
    $region6: #{tpu_custom_call.1} parent=1 // loop_footer
      %s22 = sadd.s32 1, %s18
    $region7: #{tpu_custom_call.1} parent=1 // loop_footer_branch
      %17 = sbr.rel target = $region3
    $region8: #{tpu_custom_call.1} parent=1 // loop_exit
      _
    %281 = vsyncpa [#allocation5], 1
    %s282 = scalar_lea.sflag [#allocation5], 1
    %283 = vsyncpa %s282, 1
    %284 = vsyncpa [#allocation6], 1
    %s285 = scalar_lea.sflag [#allocation6], 1
    %286 = vsyncpa %s285, 1

</llo_original>
